<compile_context>
chip_gen: v5e
topology: v5e:2x2
jax: 0.10.0
libtpu: 0.0.40
codegen_flags: <defaults>
</compile_context>

<pallas_src>
import functools

import jax
import jax.numpy as jnp
from jax import lax
from jax.experimental import pallas as pl
from jax.experimental.pallas import tpu as pltpu

SELU_ALPHA = 1.6732632423543772
SELU_SCALE = 1.0507009873554805


def _conv3x3_selu_kernel(x_ref, w_ref, b_ref, o_ref, xpad_ref, patch_ref, *,
                         H, W):
    """3x3 same-conv + bias + SELU for one batch element, lane-dense layout.

    x_ref:     (1, Ci, H*W)          input image, channels-major, spatial flat
    w_ref:     (Co, 9*Ci)    bf16    weights, columns ordered (kh, kw, ci)
    b_ref:     (Co, 1)       f32     bias
    o_ref:     (1, Co, H*W)          output (NCHW with spatial flattened)
    xpad_ref:  (Ci, H*W+2W+2) f32    scratch: flat image with zero borders
    patch_ref: (9*Ci, H*W)   bf16    scratch: im2col patch (K x M)
    """
    Ci = x_ref.shape[1]
    HW = H * W

    # Flat zero-bordered image.  A border of W+1 zeros on each side covers the
    # largest tap shift (+-(W+1)); row-out-of-bounds taps land in these zero
    # borders, column-out-of-bounds taps are masked below.
    zeros_border = jnp.zeros((Ci, W + 1), dtype=xpad_ref.dtype)
    xpad_ref[:, 0:W + 1] = zeros_border
    xpad_ref[:, W + 1 + HW:HW + 2 * W + 2] = zeros_border
    xpad_ref[:, W + 1:W + 1 + HW] = x_ref[0]

    # Column index of every output pixel (hoisted out of the tap loop).
    col = lax.broadcasted_iota(jnp.int32, (1, HW), 1) % W
    not_left = col >= 1          # column w-1 is in bounds
    not_right = col <= W - 2     # column w+1 is in bounds

    # im2col: 9 static lane-offset slices of the flat image, stacked along K.
    for kh in range(3):
        for kw in range(3):
            tap = kh * 3 + kw
            off = (kh - 1) * W + (kw - 1)
            shifted = xpad_ref[:, W + 1 + off:W + 1 + off + HW]   # (Ci, HW)
            if kw == 0:
                shifted = jnp.where(not_left, shifted, 0.0)
            elif kw == 2:
                shifted = jnp.where(not_right, shifted, 0.0)
            patch_ref[tap * Ci:(tap + 1) * Ci, :] = shifted.astype(
                patch_ref.dtype)

    # Single MXU matmul: (Co, 9*Ci) x (9*Ci, HW) -> (Co, HW), f32 accumulate.
    acc = jnp.dot(w_ref[...], patch_ref[...],
                  preferred_element_type=jnp.float32)
    acc = acc + b_ref[...]

    # SELU in f32 on the lane-dense (Co, HW) tile.
    # (exp(x)-1 kept instead of expm1 to stay on guaranteed Mosaic lowerings.)
    act = SELU_SCALE * jnp.where(acc > 0, acc,
                                 SELU_ALPHA * (jnp.exp(acc) - 1.0))
    o_ref[0] = act.astype(o_ref.dtype)


@jax.jit
def basic_conv_forward(x_nchw, w_oihw, bias):
    """BasicConv forward: Conv2d(k=3, p=1, s=1) + SELU.  NCHW in, NCHW out."""
    N, Ci, H, W = x_nchw.shape
    Co = w_oihw.shape[0]
    HW = H * W

    # Free (contiguity-preserving) reshape: spatial flattened onto lanes.
    x_flat = x_nchw.reshape(N, Ci, HW)
    # (Co, Ci, 3, 3) -> (Co, 3, 3, Ci) -> (Co, 9*Ci): column = (kh*3+kw)*Ci+ci
    w2 = jnp.transpose(w_oihw, (0, 2, 3, 1)).reshape(Co, 9 * Ci)
    w2 = w2.astype(jnp.bfloat16)
    b2 = bias.reshape(Co, 1).astype(jnp.float32)

    kernel = functools.partial(_conv3x3_selu_kernel, H=H, W=W)
    out_flat = pl.pallas_call(
        kernel,
        out_shape=jax.ShapeDtypeStruct((N, Co, HW), x_nchw.dtype),
        grid=(N,),
        in_specs=[
            pl.BlockSpec((1, Ci, HW), lambda n: (n, 0, 0)),
            pl.BlockSpec((Co, 9 * Ci), lambda n: (0, 0)),
            pl.BlockSpec((Co, 1), lambda n: (0, 0)),
        ],
        out_specs=pl.BlockSpec((1, Co, HW), lambda n: (n, 0, 0)),
        scratch_shapes=[
            pltpu.VMEM((Ci, HW + 2 * W + 2), jnp.float32),   # padded image
            pltpu.VMEM((9 * Ci, HW), jnp.bfloat16),          # im2col patch
        ],
        compiler_params=pltpu.CompilerParams(
            dimension_semantics=("parallel",)),
    )(x_flat, w2, b2)

    # Free reshape back to NCHW (no transpose needed: output is already CHW).
    return out_flat.reshape(N, Co, H, W)


def _reference_forward(x_nchw, w_oihw, bias):
    """Pure-JAX reference (Conv2d 3x3 'same' + bias + SELU)."""
    y = lax.conv_general_dilated(
        x_nchw, w_oihw,
        window_strides=(1, 1),
        padding=((1, 1), (1, 1)),
        dimension_numbers=("NCHW", "OIHW", "NCHW"))
    y = y + bias.reshape(1, -1, 1, 1)
    return SELU_SCALE * jnp.where(y > 0, y, SELU_ALPHA * (jnp.exp(y) - 1.0))


if __name__ == "__main__":
    # Small deterministic example consistent with BasicConv(in_size=4, out_size=8).
    N, Cin, Cout, H, W = 2, 4, 8, 16, 16

    key = jax.random.PRNGKey(0)
    kx, kwt, kb = jax.random.split(key, 3)
    x = jax.random.normal(kx, (N, Cin, H, W), dtype=jnp.float32)
    weight = jax.random.normal(kwt, (Cout, Cin, 3, 3), dtype=jnp.float32) * 0.1
    bias = jax.random.normal(kb, (Cout,), dtype=jnp.float32) * 0.1

    out = jax.block_until_ready(basic_conv_forward(x, weight, bias))
    assert out.shape == (N, Cout, H, W)

    # Tight check against a reference that applies the same bf16 rounding to
    # the MXU operands (f32 accumulation) -> only summation order differs.
    xq = x.astype(jnp.bfloat16).astype(jnp.float32)
    wq = weight.astype(jnp.bfloat16).astype(jnp.float32)
    ref_q = jax.block_until_ready(_reference_forward(xq, wq, bias))
    assert jnp.allclose(out, ref_q, atol=2e-3, rtol=2e-3), \
        "mismatch vs bf16-rounded reference"

    # Loose check against the full-f32 reference (bf16 MXU operand rounding).
    ref_f32 = jax.block_until_ready(_reference_forward(x, weight, bias))
    assert jnp.allclose(out, ref_f32, atol=5e-2, rtol=5e-2), \
        "mismatch vs f32 reference"

    print("KERNEL_OK")
</pallas_src>

<mosaic_0001>
module attributes {stable_mosaic.version = 11 : i64} {
  func.func @_conv3x3_selu_kernel(%arg0: i32, %arg1: memref<1x4x256xf32, #tpu.memory_space<vmem>>, %arg2: memref<8x36xbf16, #tpu.memory_space<vmem>>, %arg3: memref<8x1xf32, #tpu.memory_space<vmem>>, %arg4: memref<1x8x256xf32, #tpu.memory_space<vmem>>, %arg5: memref<4x290xf32, #tpu.memory_space<vmem>>, %arg6: memref<36x256xbf16, #tpu.memory_space<vmem>>) attributes {dimension_semantics = [#tpu.dimension_semantics<parallel>], iteration_bounds = array<i64: 2>, scalar_prefetch = 0 : i64, scratch_operands = 2 : i64, tpu.core_type = #tpu.core_type<tc>, window_params = [{transform_indices = @transform_0, window_bounds = array<i64: 1, 4, 256>}, {pipeline_mode = #tpu.pipeline_mode<synchronous>, transform_indices = @transform_1, window_bounds = array<i64: 8, 36>}, {pipeline_mode = #tpu.pipeline_mode<synchronous>, transform_indices = @transform_2, window_bounds = array<i64: 8, 1>}, {transform_indices = @transform_3, window_bounds = array<i64: 1, 8, 256>}]} {
    %cst = arith.constant 0.000000e+00 : f32
    %0 = vector.broadcast %cst : f32 to vector<4x17xf32>
    %c0 = arith.constant 0 : index
    %c0_0 = arith.constant 0 : index
    %1 = vector.load %arg5[%c0, %c0_0] : memref<4x290xf32, #tpu.memory_space<vmem>>, vector<4x17xf32>
    tpu.vector_store %arg5[%c0, %c0_0], %0 {strides = array<i32>} : memref<4x290xf32, #tpu.memory_space<vmem>>, vector<4x17xf32>,
    %c0_1 = arith.constant 0 : index
    %c273 = arith.constant 273 : index
    %2 = vector.load %arg5[%c0_1, %c273] : memref<4x290xf32, #tpu.memory_space<vmem>>, vector<4x17xf32>
    tpu.vector_store %arg5[%c0_1, %c273], %0 {strides = array<i32>} : memref<4x290xf32, #tpu.memory_space<vmem>>, vector<4x17xf32>,
    %c0_2 = arith.constant 0 : index
    %c0_3 = arith.constant 0 : index
    %c0_4 = arith.constant 0 : index
    %3 = vector.load %arg1[%c0_2, %c0_3, %c0_4] : memref<1x4x256xf32, #tpu.memory_space<vmem>>, vector<1x4x256xf32>
    %4 = vector.shape_cast %3 : vector<1x4x256xf32> to vector<4x256xf32>
    %c0_5 = arith.constant 0 : index
    %c17 = arith.constant 17 : index
    %5 = vector.load %arg5[%c0_5, %c17] : memref<4x290xf32, #tpu.memory_space<vmem>>, vector<4x256xf32>
    tpu.vector_store %arg5[%c0_5, %c17], %4 {strides = array<i32>} : memref<4x290xf32, #tpu.memory_space<vmem>>, vector<4x256xf32>,
    %6 = tpu.iota {dimensions = array<i32: 1>} : vector<1x256xi32>
    %c16_i32 = arith.constant 16 : i32
    %c0_i32 = arith.constant 0 : i32
    %7 = arith.cmpi eq, %c16_i32, %c0_i32 : i32
    %c1_i32 = arith.constant 1 : i32
    %8 = arith.select %7, %c1_i32, %c16_i32 : i32
    %9 = vector.broadcast %8 : i32 to vector<1x256xi32>
    %10 = arith.remsi %6, %9 : vector<1x256xi32>
    %c0_i32_6 = arith.constant 0 : i32
    %11 = vector.broadcast %c0_i32_6 : i32 to vector<1x256xi32>
    %12 = arith.cmpi ne, %10, %11 : vector<1x256xi32>
    %c0_i32_7 = arith.constant 0 : i32
    %13 = vector.broadcast %c0_i32_7 : i32 to vector<1x256xi32>
    %14 = arith.cmpi slt, %10, %13 : vector<1x256xi32>
    %c0_i32_8 = arith.constant 0 : i32
    %15 = arith.cmpi slt, %8, %c0_i32_8 : i32
    %16 = vector.broadcast %15 : i1 to vector<1x256xi1>
    %17 = vector.broadcast %16 : vector<1x256xi1> to vector<1x256xi1>
    %18 = arith.xori %14, %17 : vector<1x256xi1>
    %19 = arith.andi %18, %12 : vector<1x256xi1>
    %20 = vector.broadcast %8 : i32 to vector<1x256xi32>
    %21 = arith.addi %10, %20 : vector<1x256xi32>
    %22 = arith.select %19, %21, %10 : vector<1x256xi1>, vector<1x256xi32>
    %c1_i32_9 = arith.constant 1 : i32
    %23 = vector.broadcast %c1_i32_9 : i32 to vector<1x256xi32>
    %24 = arith.cmpi sge, %22, %23 : vector<1x256xi32>
    %c14_i32 = arith.constant 14 : i32
    %25 = vector.broadcast %c14_i32 : i32 to vector<1x256xi32>
    %26 = arith.cmpi sle, %22, %25 : vector<1x256xi32>
    %c0_10 = arith.constant 0 : index
    %c0_11 = arith.constant 0 : index
    %27 = vector.load %arg5[%c0_10, %c0_11] : memref<4x290xf32, #tpu.memory_space<vmem>>, vector<4x256xf32>
    %cst_12 = arith.constant 0.000000e+00 : f32
    %28 = vector.shape_cast %24 : vector<1x256xi1> to vector<1x256xi1>
    %29 = vector.broadcast %28 : vector<1x256xi1> to vector<4x256xi1>
    %30 = vector.broadcast %cst_12 : f32 to vector<4x256xf32>
    %31 = arith.select %29, %27, %30 : vector<4x256xi1>, vector<4x256xf32>
    %32 = arith.truncf %31 : vector<4x256xf32> to vector<4x256xbf16>
    %c0_13 = arith.constant 0 : index
    %c0_14 = arith.constant 0 : index
    %33 = vector.load %arg6[%c0_13, %c0_14] : memref<36x256xbf16, #tpu.memory_space<vmem>>, vector<4x256xbf16>
    tpu.vector_store %arg6[%c0_13, %c0_14], %32 {strides = array<i32>} : memref<36x256xbf16, #tpu.memory_space<vmem>>, vector<4x256xbf16>,
    %c0_15 = arith.constant 0 : index
    %c1 = arith.constant 1 : index
    %34 = vector.load %arg5[%c0_15, %c1] : memref<4x290xf32, #tpu.memory_space<vmem>>, vector<4x256xf32>
    %35 = arith.truncf %34 : vector<4x256xf32> to vector<4x256xbf16>
    %c4 = arith.constant 4 : index
    %c0_16 = arith.constant 0 : index
    %36 = vector.load %arg6[%c4, %c0_16] : memref<36x256xbf16, #tpu.memory_space<vmem>>, vector<4x256xbf16>
    tpu.vector_store %arg6[%c4, %c0_16], %35 {strides = array<i32>} : memref<36x256xbf16, #tpu.memory_space<vmem>>, vector<4x256xbf16>,
    %c0_17 = arith.constant 0 : index
    %c2 = arith.constant 2 : index
    %37 = vector.load %arg5[%c0_17, %c2] : memref<4x290xf32, #tpu.memory_space<vmem>>, vector<4x256xf32>
    %cst_18 = arith.constant 0.000000e+00 : f32
    %38 = vector.shape_cast %26 : vector<1x256xi1> to vector<1x256xi1>
    %39 = vector.broadcast %38 : vector<1x256xi1> to vector<4x256xi1>
    %40 = vector.broadcast %cst_18 : f32 to vector<4x256xf32>
    %41 = arith.select %39, %37, %40 : vector<4x256xi1>, vector<4x256xf32>
    %42 = arith.truncf %41 : vector<4x256xf32> to vector<4x256xbf16>
    %c8 = arith.constant 8 : index
    %c0_19 = arith.constant 0 : index
    %43 = vector.load %arg6[%c8, %c0_19] : memref<36x256xbf16, #tpu.memory_space<vmem>>, vector<4x256xbf16>
    tpu.vector_store %arg6[%c8, %c0_19], %42 {strides = array<i32>} : memref<36x256xbf16, #tpu.memory_space<vmem>>, vector<4x256xbf16>,
    %c0_20 = arith.constant 0 : index
    %c16 = arith.constant 16 : index
    %44 = vector.load %arg5[%c0_20, %c16] : memref<4x290xf32, #tpu.memory_space<vmem>>, vector<4x256xf32>
    %cst_21 = arith.constant 0.000000e+00 : f32
    %45 = vector.shape_cast %24 : vector<1x256xi1> to vector<1x256xi1>
    %46 = vector.broadcast %45 : vector<1x256xi1> to vector<4x256xi1>
    %47 = vector.broadcast %cst_21 : f32 to vector<4x256xf32>
    %48 = arith.select %46, %44, %47 : vector<4x256xi1>, vector<4x256xf32>
    %49 = arith.truncf %48 : vector<4x256xf32> to vector<4x256xbf16>
    %c12 = arith.constant 12 : index
    %c0_22 = arith.constant 0 : index
    %50 = vector.load %arg6[%c12, %c0_22] : memref<36x256xbf16, #tpu.memory_space<vmem>>, vector<4x256xbf16>
    tpu.vector_store %arg6[%c12, %c0_22], %49 {strides = array<i32>} : memref<36x256xbf16, #tpu.memory_space<vmem>>, vector<4x256xbf16>,
    %c0_23 = arith.constant 0 : index
    %c17_24 = arith.constant 17 : index
    %51 = vector.load %arg5[%c0_23, %c17_24] : memref<4x290xf32, #tpu.memory_space<vmem>>, vector<4x256xf32>
    %52 = arith.truncf %51 : vector<4x256xf32> to vector<4x256xbf16>
    %c16_25 = arith.constant 16 : index
    %c0_26 = arith.constant 0 : index
    %53 = vector.load %arg6[%c16_25, %c0_26] : memref<36x256xbf16, #tpu.memory_space<vmem>>, vector<4x256xbf16>
    tpu.vector_store %arg6[%c16_25, %c0_26], %52 {strides = array<i32>} : memref<36x256xbf16, #tpu.memory_space<vmem>>, vector<4x256xbf16>,
    %c0_27 = arith.constant 0 : index
    %c18 = arith.constant 18 : index
    %54 = vector.load %arg5[%c0_27, %c18] : memref<4x290xf32, #tpu.memory_space<vmem>>, vector<4x256xf32>
    %cst_28 = arith.constant 0.000000e+00 : f32
    %55 = vector.shape_cast %26 : vector<1x256xi1> to vector<1x256xi1>
    %56 = vector.broadcast %55 : vector<1x256xi1> to vector<4x256xi1>
    %57 = vector.broadcast %cst_28 : f32 to vector<4x256xf32>
    %58 = arith.select %56, %54, %57 : vector<4x256xi1>, vector<4x256xf32>
    %59 = arith.truncf %58 : vector<4x256xf32> to vector<4x256xbf16>
    %c20 = arith.constant 20 : index
    %c0_29 = arith.constant 0 : index
    %60 = vector.load %arg6[%c20, %c0_29] : memref<36x256xbf16, #tpu.memory_space<vmem>>, vector<4x256xbf16>
    tpu.vector_store %arg6[%c20, %c0_29], %59 {strides = array<i32>} : memref<36x256xbf16, #tpu.memory_space<vmem>>, vector<4x256xbf16>,
    %c0_30 = arith.constant 0 : index
    %c32 = arith.constant 32 : index
    %61 = vector.load %arg5[%c0_30, %c32] : memref<4x290xf32, #tpu.memory_space<vmem>>, vector<4x256xf32>
    %cst_31 = arith.constant 0.000000e+00 : f32
    %62 = vector.shape_cast %24 : vector<1x256xi1> to vector<1x256xi1>
    %63 = vector.broadcast %62 : vector<1x256xi1> to vector<4x256xi1>
    %64 = vector.broadcast %cst_31 : f32 to vector<4x256xf32>
    %65 = arith.select %63, %61, %64 : vector<4x256xi1>, vector<4x256xf32>
    %66 = arith.truncf %65 : vector<4x256xf32> to vector<4x256xbf16>
    %c24 = arith.constant 24 : index
    %c0_32 = arith.constant 0 : index
    %67 = vector.load %arg6[%c24, %c0_32] : memref<36x256xbf16, #tpu.memory_space<vmem>>, vector<4x256xbf16>
    tpu.vector_store %arg6[%c24, %c0_32], %66 {strides = array<i32>} : memref<36x256xbf16, #tpu.memory_space<vmem>>, vector<4x256xbf16>,
    %c0_33 = arith.constant 0 : index
    %c33 = arith.constant 33 : index
    %68 = vector.load %arg5[%c0_33, %c33] : memref<4x290xf32, #tpu.memory_space<vmem>>, vector<4x256xf32>
    %69 = arith.truncf %68 : vector<4x256xf32> to vector<4x256xbf16>
    %c28 = arith.constant 28 : index
    %c0_34 = arith.constant 0 : index
    %70 = vector.load %arg6[%c28, %c0_34] : memref<36x256xbf16, #tpu.memory_space<vmem>>, vector<4x256xbf16>
    tpu.vector_store %arg6[%c28, %c0_34], %69 {strides = array<i32>} : memref<36x256xbf16, #tpu.memory_space<vmem>>, vector<4x256xbf16>,
    %c0_35 = arith.constant 0 : index
    %c34 = arith.constant 34 : index
    %71 = vector.load %arg5[%c0_35, %c34] : memref<4x290xf32, #tpu.memory_space<vmem>>, vector<4x256xf32>
    %cst_36 = arith.constant 0.000000e+00 : f32
    %72 = vector.shape_cast %26 : vector<1x256xi1> to vector<1x256xi1>
    %73 = vector.broadcast %72 : vector<1x256xi1> to vector<4x256xi1>
    %74 = vector.broadcast %cst_36 : f32 to vector<4x256xf32>
    %75 = arith.select %73, %71, %74 : vector<4x256xi1>, vector<4x256xf32>
    %76 = arith.truncf %75 : vector<4x256xf32> to vector<4x256xbf16>
    %c32_37 = arith.constant 32 : index
    %c0_38 = arith.constant 0 : index
    %77 = vector.load %arg6[%c32_37, %c0_38] : memref<36x256xbf16, #tpu.memory_space<vmem>>, vector<4x256xbf16>
    tpu.vector_store %arg6[%c32_37, %c0_38], %76 {strides = array<i32>} : memref<36x256xbf16, #tpu.memory_space<vmem>>, vector<4x256xbf16>,
    %c0_39 = arith.constant 0 : index
    %c0_40 = arith.constant 0 : index
    %78 = vector.load %arg2[%c0_39, %c0_40] : memref<8x36xbf16, #tpu.memory_space<vmem>>, vector<8x36xbf16>
    %c0_41 = arith.constant 0 : index
    %c0_42 = arith.constant 0 : index
    %79 = vector.load %arg6[%c0_41, %c0_42] : memref<36x256xbf16, #tpu.memory_space<vmem>>, vector<36x256xbf16>
    %cst_43 = arith.constant dense<0.000000e+00> : vector<8x256xf32>
    %80 = tpu.matmul %78, %79, %cst_43 {dimension_numbers = #tpu.dot_dimension_numbers<[1], [0], [0], [1], [0, 0, 1, 1], [], []>} : vector<8x36xbf16>, vector<36x256xbf16>, vector<8x256xf32> -> vector<8x256xf32>
    %c0_44 = arith.constant 0 : index
    %c0_45 = arith.constant 0 : index
    %81 = vector.load %arg3[%c0_44, %c0_45] : memref<8x1xf32, #tpu.memory_space<vmem>>, vector<8x1xf32>
    %82 = vector.broadcast %81 : vector<8x1xf32> to vector<8x256xf32>
    %83 = arith.addf %80, %82 : vector<8x256xf32>
    %cst_46 = arith.constant 0.000000e+00 : f32
    %84 = vector.broadcast %cst_46 : f32 to vector<8x256xf32>
    %85 = arith.cmpf ogt, %83, %84 : vector<8x256xf32>
    %86 = math.exp %83 : vector<8x256xf32>
    %cst_47 = arith.constant 1.000000e+00 : f32
    %87 = vector.broadcast %cst_47 : f32 to vector<8x256xf32>
    %88 = arith.subf %86, %87 : vector<8x256xf32>
    %cst_48 = arith.constant 1.67326319 : f32
    %89 = vector.broadcast %cst_48 : f32 to vector<8x256xf32>
    %90 = arith.mulf %89, %88 : vector<8x256xf32>
    %91 = arith.select %85, %83, %90 : vector<8x256xi1>, vector<8x256xf32>
    %cst_49 = arith.constant 1.05070102 : f32
    %92 = vector.broadcast %cst_49 : f32 to vector<8x256xf32>
    %93 = arith.mulf %92, %91 : vector<8x256xf32>
    %c0_50 = arith.constant 0 : index
    %c0_51 = arith.constant 0 : index
    %c0_52 = arith.constant 0 : index
    %94 = vector.load %arg4[%c0_50, %c0_51, %c0_52] : memref<1x8x256xf32, #tpu.memory_space<vmem>>, vector<1x8x256xf32>
    %95 = vector.shape_cast %94 : vector<1x8x256xf32> to vector<8x256xf32>
    %96 = vector.shape_cast %93 : vector<8x256xf32> to vector<1x8x256xf32>
    tpu.vector_store %arg4[%c0_50, %c0_51, %c0_52], %96 {strides = array<i32>} : memref<1x8x256xf32, #tpu.memory_space<vmem>>, vector<1x8x256xf32>,
    return
  }
  func.func @transform_0(%arg0: i32) -> (i32, i32, i32) {
    %c0_i32 = arith.constant 0 : i32
    %c0_i32_0 = arith.constant 0 : i32
    %c0_i32_1 = arith.constant 0 : i32
    return %arg0, %c0_i32, %c0_i32_0 : i32, i32, i32
  }
  func.func @transform_1(%arg0: i32) -> (i32, i32) {
    %c0_i32 = arith.constant 0 : i32
    %c0_i32_0 = arith.constant 0 : i32
    %c0_i32_1 = arith.constant 0 : i32
    return %c0_i32, %c0_i32_0 : i32, i32
  }
  func.func @transform_2(%arg0: i32) -> (i32, i32) {
    %c0_i32 = arith.constant 0 : i32
    %c0_i32_0 = arith.constant 0 : i32
    %c0_i32_1 = arith.constant 0 : i32
    return %c0_i32, %c0_i32_0 : i32, i32
  }
  func.func @transform_3(%arg0: i32) -> (i32, i32, i32) {
    %c0_i32 = arith.constant 0 : i32
    %c0_i32_0 = arith.constant 0 : i32
    %c0_i32_1 = arith.constant 0 : i32
    return %arg0, %c0_i32, %c0_i32_0 : i32, i32, i32
  }
}

</mosaic_0001>

<llo_original>
// kernel: basic_conv_forward.1
$region0: #{basic_conv_forward.1}
  #allocation0 [shape = 'u32[]', space=smem, size = 0x4, offset = 0x4, fixed_abs, tag = 'smem constant byte address 0x4 - core index']
  #allocation1 [shape = 'u32[72,128]{1,0:T(1,128)}', space=vmem, size = 0x9000, scoped, tag = 'internal scratch']
  #allocation2 [shape = 'f32[4,290]{1,0:T(4,128)}', space=vmem, size = 0x1800, scoped, tag = 'scratch operand']
  #allocation3 [shape = 'bf16[36,256]{1,0:T(8,128)(2,1)}', space=vmem, size = 0x5000, scoped, tag = 'scratch operand']
  %s0 = inlined_call_operand.vmem [shape: f32[2,4,256], index: 0, kind: input, shape index: {}]
  %s1 = inlined_call_operand.vmem [shape: bf16[8,36], index: 1, kind: input, shape index: {}]
  %s2 = inlined_call_operand.vmem [shape: f32[8,1], index: 2, kind: input, shape index: {}]
  %s3 = inlined_call_operand.vmem [shape: f32[2,8,256], index: 3, kind: output, shape index: {}]
  %s4 = sld [smem:[#allocation0]]
  $region45: #{basic_conv_forward.1} parent=0
    _
  %s6 = ssub.s32 1, %s4
  %s7 = scalar_select 0, %s6, %s4
  loop: start=0, step=1, limit=4
  $region2: #{basic_conv_forward.1} parent=0 // loop_pre_header
    _
  $region3: #{basic_conv_forward.1} parent=0 // loop_header
    %s9 = sphi 0, %s13
    %p10 = scmp.ge.s32.totalorder %s9, 4
    %s19 = sphi 0, %s21
    %s22 = sphi 0, %s19
    %s23 = sphi 0, %s22
    %s39 = sphi 0, %s23
    %s43 = sphi 0, %s43
    %s45 = sphi 0, %s43
    %s46 = sphi 0, %s45
    %s60 = sphi 0, %s46
    %s64 = sphi 0, %s64
    %s66 = sphi 0, %s64
    %s67 = sphi 0, %s66
    %s81 = sphi 0, %s67
    %s87 = sphi 0, %s89
    %s90 = sphi 0, %s87
    %s91 = sphi 0, %s90
    %s107 = sphi 0, %s91
  $region4: #{basic_conv_forward.1} parent=0 // loop_header_branch
    %12 = sbr.rel (%p10) target = $region8
  $region5: #{basic_conv_forward.1} parent=0 // loop_body
    %s14 = ssub.s32 %s9, 1
    %s15 = ssub.s32 %s9, 2
    %s16 = sadd.s32 %s9, 1
    %s17 = ssub.s32 %s9, %s16
    %p18 = scmp.eq.s32.totalorder %s17, 0
    %s20 = sadd.s32 %s19, 1
    %s21 = scalar_select %p18, %s19, %s20
    %p24 = pneg %p18
    %p25 = scmp.eq.s32.totalorder %s9, 1
    %p26 = por %p24, %p25
    %p27 = scmp.ne.s32.totalorder %s19, %s22
    %p28 = scmp.eq.s32.totalorder %s9, 0
    %p29 = por %p27, %p28
    %p30 = scmp.ne.s32.totalorder %s19, %s22
    %p31 = scmp.eq.s32.totalorder %s14, 1
    %p32 = por %p30, %p31
    %p33 = scmp.ne.s32.totalorder %s22, %s23
    %p34 = scmp.eq.s32.totalorder %s14, 0
    %p35 = por %p33, %p34
    %p36 = scmp.ne.s32.totalorder %s22, %s23
    %p37 = scmp.eq.s32.totalorder %s15, 1
    %p38 = por %p36, %p37
    %p40 = scmp.ne.s32.totalorder %s23, %s39
    %p41 = scmp.eq.s32.totalorder %s15, 0
    %p42 = por %p40, %p41
    %s44 = sadd.s32 %s43, 1
    %p47 = scmp.eq.s32.totalorder %s9, 1
    %p48 = scmp.ne.s32.totalorder %s43, %s45
    %p49 = scmp.eq.s32.totalorder %s9, 0
    %p50 = por %p48, %p49
    %p51 = scmp.ne.s32.totalorder %s43, %s45
    %p52 = scmp.eq.s32.totalorder %s14, 1
    %p53 = por %p51, %p52
    %p54 = scmp.ne.s32.totalorder %s45, %s46
    %p55 = scmp.eq.s32.totalorder %s14, 0
    %p56 = por %p54, %p55
    %p57 = scmp.ne.s32.totalorder %s45, %s46
    %p58 = scmp.eq.s32.totalorder %s15, 1
    %p59 = por %p57, %p58
    %p61 = scmp.ne.s32.totalorder %s46, %s60
    %p62 = scmp.eq.s32.totalorder %s15, 0
    %p63 = por %p61, %p62
    %s65 = sadd.s32 %s64, 1
    %p68 = scmp.eq.s32.totalorder %s9, 1
    %p69 = scmp.ne.s32.totalorder %s64, %s66
    %p70 = scmp.eq.s32.totalorder %s9, 0
    %p71 = por %p69, %p70
    %p72 = scmp.ne.s32.totalorder %s64, %s66
    %p73 = scmp.eq.s32.totalorder %s14, 1
    %p74 = por %p72, %p73
    %p75 = scmp.ne.s32.totalorder %s66, %s67
    %p76 = scmp.eq.s32.totalorder %s14, 0
    %p77 = por %p75, %p76
    %p78 = scmp.ne.s32.totalorder %s66, %s67
    %p79 = scmp.eq.s32.totalorder %s15, 1
    %p80 = por %p78, %p79
    %p82 = scmp.ne.s32.totalorder %s67, %s81
    %p83 = scmp.eq.s32.totalorder %s15, 0
    %p84 = por %p82, %p83
    %s85 = ssub.s32 %s9, %s16
    %p86 = scmp.eq.s32.totalorder %s85, 0
    %s88 = sadd.s32 %s87, 1
    %s89 = scalar_select %p86, %s87, %s88
    %p92 = pneg %p86
    %p93 = scmp.eq.s32.totalorder %s9, 1
    %p94 = por %p92, %p93
    %p95 = scmp.ne.s32.totalorder %s87, %s90
    %p96 = scmp.eq.s32.totalorder %s9, 0
    %p97 = por %p95, %p96
    %p98 = scmp.ne.s32.totalorder %s87, %s90
    %p99 = scmp.eq.s32.totalorder %s14, 1
    %p100 = por %p98, %p99
    %p101 = scmp.ne.s32.totalorder %s90, %s91
    %p102 = scmp.eq.s32.totalorder %s14, 0
    %p103 = por %p101, %p102
    %p104 = scmp.ne.s32.totalorder %s90, %s91
    %p105 = scmp.eq.s32.totalorder %s15, 1
    %p106 = por %p104, %p105
    %p108 = scmp.ne.s32.totalorder %s91, %s107
    %p109 = scmp.eq.s32.totalorder %s15, 0
    %p110 = por %p108, %p109
    %p111 = scmp.le.s32.totalorder 1, %s9
    %p112 = scmp.lt.s32.totalorder %s9, 3
    %p113 = pnand %p111, %p112
    %p114 = pneg %p113
    // Predicated region
    $region9: #{basic_conv_forward.1} parent=5 // pred_check
      _
    $region10: #{basic_conv_forward.1} parent=5 // pred_check_branch
      %116 = sbr.rel (%p113) target = $region12
    $region11: #{basic_conv_forward.1} parent=5 // pred_region
      %s117 = ssub.s32 %s9, 1
      // Predicated region
      $region13: #{basic_conv_forward.1} parent=11 // pred_check
        %p118 = pneg %p56
      $region14: #{basic_conv_forward.1} parent=11 // pred_check_branch
        %120 = sbr.rel (%p118) target = $region16
      $region15: #{basic_conv_forward.1} parent=11 // pred_region
        _
      $region16: #{basic_conv_forward.1} parent=11 // pred_fallthru
        _
      // Predicated region
      $region17: #{basic_conv_forward.1} parent=11 // pred_check
        %p121 = pneg %p77
      $region18: #{basic_conv_forward.1} parent=11 // pred_check_branch
        %123 = sbr.rel (%p121) target = $region20
      $region19: #{basic_conv_forward.1} parent=11 // pred_region
        _
      $region20: #{basic_conv_forward.1} parent=11 // pred_fallthru
        _
    $region12: #{basic_conv_forward.1} parent=5 // pred_fallthru
      _
    %p124 = scmp.lt.s32.totalorder %s9, 2
    // Predicated region
    $region21: #{basic_conv_forward.1} parent=5 // pred_check
      %p125 = pneg %p124
    $region22: #{basic_conv_forward.1} parent=5 // pred_check_branch
      %127 = sbr.rel (%p125) target = $region24
    $region23: #{basic_conv_forward.1} parent=5 // pred_region
      // Predicated region
      $region25: #{basic_conv_forward.1} parent=23 // pred_check
        %p128 = pneg %p29
      $region26: #{basic_conv_forward.1} parent=23 // pred_check_branch
        %130 = sbr.rel (%p128) target = $region28
      $region27: #{basic_conv_forward.1} parent=23 // pred_region
        %p131 = scmp.lt.s32.totalorder %s9, 1
        %s132 = scalar_select %p131, %s9, 1
        %s133 = smul.addr %s132, 2
        %s134 = smul.addr %s133, 4
        %s135 = scalar_lea.vmem %s0, %s134
      $region28: #{basic_conv_forward.1} parent=23 // pred_fallthru
        _
    $region24: #{basic_conv_forward.1} parent=5 // pred_fallthru
      _
    %p136 = scmp.le.s32.totalorder 1, %s9
    %p137 = scmp.lt.s32.totalorder %s9, 3
    %p138 = pnand %p136, %p137
    %p139 = pneg %p138
    // Predicated region
    $region29: #{basic_conv_forward.1} parent=5 // pred_check
      _
    $region30: #{basic_conv_forward.1} parent=5 // pred_check_branch
      %141 = sbr.rel (%p138) target = $region32
    $region31: #{basic_conv_forward.1} parent=5 // pred_region
      %s142 = ssub.s32 %s9, 1
      %p143 = scmp.lt.s32.totalorder %s14, 1
      %s144 = scalar_select %p143, %s14, 1
      %s145 = smul.addr %s144, 2
      %s146 = smul.addr %s145, 4
      %s147 = scalar_lea.vmem %s0, %s146
      %p148 = pneg %p35
      %p149 = pneg %p32
      %p150 = pneg %p56
      %p151 = pneg %p53
      %p152 = pneg %p77
      %p153 = pneg %p74
      %p154 = pneg %p103
      %p155 = pneg %p100
      %p156 = scmp.lt.s32.totalorder %s14, 1
      %s157 = scalar_select %p156, %s14, 1
      %s158 = smul.addr %s157, 2
      %s159 = smul.addr %s158, 8
      %s160 = scalar_lea.vmem %s3, %s159
      %p161 = scmp.lt.s32.totalorder %s14, 1
      %s162 = scalar_select %p161, %s14, 1
      %s163 = smul.addr %s162, 2
      %s164 = smul.addr %s163, 4
      %s165 = scalar_lea.vmem %s0, %s164
      %p166 = scmp.lt.s32.totalorder %s14, 1
      %s167 = scalar_select %p166, %s14, 1
      %s168 = smul.addr %s167, 2
      %s169 = smul.addr %s168, 8
      %s170 = scalar_lea.vmem %s3, %s169
      %vm172 = vcmask 134144
      %173 = vst.msk [vmem:[#allocation2] sm:$0xf] %vm172, 0.0
      %vm174 = vcmask 273544
      %175 = vst.msk [vmem:[#allocation2 + $0x8] sm:$0xf] %vm174, 0.0
      %v176 = vld [vmem:[%s165] sm:$0xff]
      %178 = vrot.lane.b32.xlu0 %v176, 17
      %v179 = vpop.permute.xlu0 %178
      %v180 = vrot.slane %v179, 4
      %vm181 = vcmask 138240
      %v182 = vsel %vm181, %v180, %v179
      %vm185 = vcmask 1043592
      %vm186 = vcmask 1047556
      %vm187 = vmor %vm186, %vm185
      %188 = vst.msk [vmem:[#allocation2] sm:$0xff] %vm187, %v182
      %189 = vst.msk [vmem:[#allocation2 + $0x8] sm:$0xf] %vm172, %v180
      %v190 = vlaneseq
      %v191 = vand.u32 %v190, 127
      %v192 = vadd.s32 %v191, 128
      %vm193 = vcmp.lt.s32.totalorder %v191, 0
      %v194 = vsub.s32 0, %v191
      %v195 = vsel %vm193, %v194, %v191
      %v196 = vshrl.u32 %v195, 4
      %v197 = vand.u32 %v195, 15
      %v198 = vsub.s32 0, %v197
      %v199 = vsel %vm193, %v198, %v197
      %vm200 = vcmp.lt.s32.totalorder %v192, 0
      %v201 = vsub.s32 0, %v192
      %v202 = vsel %vm200, %v201, %v192
      %v203 = vshrl.u32 %v202, 4
      %v204 = vand.u32 %v202, 15
      %v205 = vsub.s32 0, %v204
      %v206 = vsel %vm200, %v205, %v204
      %vm207 = vcmp.ne.s32.totalorder %v199, 0
      %vm208 = vcmp.ne.s32.totalorder %v206, 0
      %vm209 = vcmp.lt.s32.totalorder %v199, 0
      %vm210 = vcmp.lt.s32.totalorder %v206, 0
      %vm211 = vmand %vm209, %vm207
      %vm212 = vmand %vm210, %vm208
      %v213 = vadd.s32 %v199, 16
      %v214 = vadd.s32 %v206, 16
      %v215 = vsel %vm211, %v213, %v199
      %v216 = vsel %vm212, %v214, %v206
      %vm217 = vcmp.ge.s32.totalorder %v215, 1
      %vm218 = vcmp.ge.s32.totalorder %v216, 1
      %vm219 = vcmp.le.s32.totalorder %v215, 14
      %vm220 = vcmp.le.s32.totalorder %v216, 14
      %v221 = vld [vmem:[#allocation2] sm:$0xff]
      %v222 = vsel %vm217, 1, 0
      %v223 = vsel %vm218, 1, 0
      %vm224 = vcmp.eq.s32.totalorder %v222, 1
      %vm225 = vcmp.eq.s32.totalorder %v223, 1
      %227 = vst [vmem:[#allocation1] ss:$2 sm:$0xff] %v221
      %v228 = vld.sshfl [vmem:[#allocation1] sm:$0xff pattern:$0x75316420]
      %v229 = vld.sshfl [vmem:[#allocation1 + $0x8] sm:$0xff pattern:$0x75316420]
      %v232 = vsel %vm224, %v228, 0.0
      %v233 = vsel %vm225, %v229, 0.0
      %v234 = vpack.c.bf16 %v233, %v232
      %235 = vst [vmem:[#allocation3] sm:$0x33] %v234
      %v236 = vld [vmem:[#allocation2] sm:$0xff]
      %v237 = vld [vmem:[#allocation2 + $0x8] sm:$0xf]
      %240 = vst [vmem:[#allocation1] ss:$2 sm:$0xff] %v236
      %s241 = scalar_lea.vmem [#allocation1], 16
      %242 = vst [vmem:[%s241] ss:$2 sm:$0xff] %v237
      %v243 = vld.sshfl [vmem:[#allocation1] sm:$0xff pattern:$0x75316420]
      %v244 = vld.sshfl [vmem:[#allocation1 + $0x8] sm:$0xff pattern:$0x75316420]
      %v245 = vld.sshfl [vmem:[#allocation1 + $0x10] sm:$0xff pattern:$0x75316420]
      %v249 = vpack.c.bf16 %v244, %v243
      %v250 = vpack.c.bf16 %v245, %v245
      %v253 = vrot.slane %v249, 6
      %v254 = vrot.slane %v250, 6
      %255 = vrot.lane.b32.xlu0 %v253, 127
      %v256 = vpop.permute.xlu0 %255
      %257 = vrot.lane.b32.xlu0 %v254, 127
      %v258 = vpop.permute.xlu0 %257
      %v259 = vrot.slane %v256, 4
      %v260 = vrot.slane %v258, 4
      %vm261 = vcmask 1043456
      %v262 = vsel %vm261, %v259, %v260
      %vm263 = vcmask 1039360
      %v264 = vsel %vm263, %v256, %v262
      %266 = vst [vmem:[#allocation3] sm:$0xcc] %v264
      %v267 = vld [vmem:[#allocation2] sm:$0xff]
      %v268 = vld [vmem:[#allocation2 + $0x8] sm:$0xf]
      %v269 = vsel %vm219, 1, 0
      %v270 = vsel %vm220, 1, 0
      %vm271 = vcmp.eq.s32.totalorder %v269, 1
      %vm272 = vcmp.eq.s32.totalorder %v270, 1
      %275 = vst [vmem:[#allocation1] ss:$2 sm:$0xff] %v267
      %s276 = scalar_lea.vmem [#allocation1], 16
      %277 = vst [vmem:[%s276] ss:$2 sm:$0xff] %v268
      %v278 = vld.sshfl [vmem:[#allocation1] sm:$0xff pattern:$0x75316420]
      %v279 = vld.sshfl [vmem:[#allocation1 + $0x8] sm:$0xff pattern:$0x75316420]
      %v280 = vld.sshfl [vmem:[#allocation1 + $0x10] sm:$0xff pattern:$0x75316420]
      %281 = vrot.lane.b32.xlu0 %v278, 126
      %v282 = vpop.permute.xlu0 %281
      %283 = vrot.lane.b32.xlu0 %v279, 126
      %v284 = vpop.permute.xlu0 %283
      %285 = vrot.lane.b32.xlu0 %v280, 126
      %v286 = vpop.permute.xlu0 %285
      %vm287 = vcmask 1031168
      %v288 = vsel %vm287, %v282, %v284
      %v289 = vsel %vm287, %v284, %v286
      %v292 = vsel %vm271, %v288, 0.0
      %v293 = vsel %vm272, %v289, 0.0
      %v294 = vpack.c.bf16 %v293, %v292
      %295 = vst [vmem:[#allocation3 + $0x8] sm:$0x33] %v294
      %v296 = vld [vmem:[#allocation2] sm:$0xff]
      %v297 = vld [vmem:[#allocation2 + $0x8] sm:$0xf]
      %300 = vst [vmem:[#allocation1] ss:$2 sm:$0xff] %v296
      %s301 = scalar_lea.vmem [#allocation1], 16
      %302 = vst [vmem:[%s301] ss:$2 sm:$0xff] %v297
      %v303 = vld.sshfl [vmem:[#allocation1] sm:$0xff pattern:$0x75316420]
      %v304 = vld.sshfl [vmem:[#allocation1 + $0x8] sm:$0xff pattern:$0x75316420]
      %v305 = vld.sshfl [vmem:[#allocation1 + $0x10] sm:$0xff pattern:$0x75316420]
      %306 = vrot.lane.b32.xlu0 %v303, 112
      %v307 = vpop.permute.xlu0 %306
      %308 = vrot.lane.b32.xlu0 %v304, 112
      %v309 = vpop.permute.xlu0 %308
      %310 = vrot.lane.b32.xlu0 %v305, 112
      %v311 = vpop.permute.xlu0 %310
      %vm312 = vcmask 916480
      %v313 = vsel %vm312, %v307, %v309
      %v314 = vsel %vm312, %v309, %v311
      %v317 = vsel %vm224, %v313, 0.0
      %v318 = vsel %vm225, %v314, 0.0
      %v319 = vpack.c.bf16 %v318, %v317
      %v321 = vrot.slane %v319, 6
      %323 = vst [vmem:[#allocation3 + $0x8] sm:$0xcc] %v321
      %v324 = vld [vmem:[#allocation2] sm:$0xff]
      %v325 = vld [vmem:[#allocation2 + $0x8] sm:$0xf]
      %328 = vst [vmem:[#allocation1] ss:$2 sm:$0xff] %v324
      %s329 = scalar_lea.vmem [#allocation1], 16
      %330 = vst [vmem:[%s329] ss:$2 sm:$0xff] %v325
      %v331 = vld.sshfl [vmem:[#allocation1] sm:$0xff pattern:$0x75316420]
      %v332 = vld.sshfl [vmem:[#allocation1 + $0x8] sm:$0xff pattern:$0x75316420]
      %v333 = vld.sshfl [vmem:[#allocation1 + $0x10] sm:$0xff pattern:$0x75316420]
      %v337 = vpack.c.bf16 %v332, %v331
      %v338 = vpack.c.bf16 %v333, %v333
      %341 = vrot.lane.b32.xlu0 %v337, 111
      %v342 = vpop.permute.xlu0 %341
      %343 = vrot.lane.b32.xlu0 %v338, 111
      %v344 = vpop.permute.xlu0 %343
      %v345 = vrot.slane %v342, 4
      %v346 = vrot.slane %v344, 4
      %v347 = vsel %vm261, %v345, %v346
      %vm348 = vcmask 908288
      %v349 = vsel %vm348, %v342, %v347
      %351 = vst [vmem:[#allocation3 + $0x10] sm:$0x33] %v349
      %v352 = vld [vmem:[#allocation2] sm:$0xff]
      %v353 = vld [vmem:[#allocation2 + $0x8] sm:$0xf]
      %356 = vst [vmem:[#allocation1] ss:$2 sm:$0xff] %v352
      %s357 = scalar_lea.vmem [#allocation1], 16
      %358 = vst [vmem:[%s357] ss:$2 sm:$0xff] %v353
      %v359 = vld.sshfl [vmem:[#allocation1] sm:$0xff pattern:$0x75316420]
      %v360 = vld.sshfl [vmem:[#allocation1 + $0x8] sm:$0xff pattern:$0x75316420]
      %v361 = vld.sshfl [vmem:[#allocation1 + $0x10] sm:$0xff pattern:$0x75316420]
      %362 = vrot.lane.b32.xlu0 %v359, 110
      %v363 = vpop.permute.xlu0 %362
      %364 = vrot.lane.b32.xlu0 %v360, 110
      %v365 = vpop.permute.xlu0 %364
      %366 = vrot.lane.b32.xlu0 %v361, 110
      %v367 = vpop.permute.xlu0 %366
      %vm368 = vcmask 900096
      %v369 = vsel %vm368, %v363, %v365
      %v370 = vsel %vm368, %v365, %v367
      %v373 = vsel %vm271, %v369, 0.0
      %v374 = vsel %vm272, %v370, 0.0
      %v375 = vpack.c.bf16 %v374, %v373
      %v377 = vrot.slane %v375, 6
      %379 = vst [vmem:[#allocation3 + $0x10] sm:$0xcc] %v377
      %v380 = vld [vmem:[#allocation2] sm:$0xff]
      %v381 = vld [vmem:[#allocation2 + $0x8] sm:$0xf]
      %384 = vst [vmem:[#allocation1] ss:$2 sm:$0xff] %v380
      %s385 = scalar_lea.vmem [#allocation1], 16
      %386 = vst [vmem:[%s385] ss:$2 sm:$0xff] %v381
      %v387 = vld.sshfl [vmem:[#allocation1] sm:$0xff pattern:$0x75316420]
      %v388 = vld.sshfl [vmem:[#allocation1 + $0x8] sm:$0xff pattern:$0x75316420]
      %v389 = vld.sshfl [vmem:[#allocation1 + $0x10] sm:$0xff pattern:$0x75316420]
      %390 = vrot.lane.b32.xlu0 %v387, 96
      %v391 = vpop.permute.xlu0 %390
      %392 = vrot.lane.b32.xlu0 %v388, 96
      %v393 = vpop.permute.xlu0 %392
      %394 = vrot.lane.b32.xlu0 %v389, 96
      %v395 = vpop.permute.xlu0 %394
      %vm396 = vcmask 785408
      %v397 = vsel %vm396, %v391, %v393
      %v398 = vsel %vm396, %v393, %v395
      %v401 = vsel %vm224, %v397, 0.0
      %v402 = vsel %vm225, %v398, 0.0
      %v403 = vpack.c.bf16 %v402, %v401
      %404 = vst [vmem:[#allocation3 + $0x18] sm:$0x33] %v403
      %v405 = vld [vmem:[#allocation2] sm:$0xff]
      %v406 = vld [vmem:[#allocation2 + $0x8] sm:$0xf]
      %409 = vst [vmem:[#allocation1] ss:$2 sm:$0xff] %v405
      %s410 = scalar_lea.vmem [#allocation1], 16
      %411 = vst [vmem:[%s410] ss:$2 sm:$0xff] %v406
      %v412 = vld.sshfl [vmem:[#allocation1] sm:$0xff pattern:$0x75316420]
      %v413 = vld.sshfl [vmem:[#allocation1 + $0x8] sm:$0xff pattern:$0x75316420]
      %v414 = vld.sshfl [vmem:[#allocation1 + $0x10] sm:$0xff pattern:$0x75316420]
      %v418 = vpack.c.bf16 %v413, %v412
      %v419 = vpack.c.bf16 %v414, %v414
      %v422 = vrot.slane %v418, 6
      %v423 = vrot.slane %v419, 6
      %424 = vrot.lane.b32.xlu0 %v422, 95
      %v425 = vpop.permute.xlu0 %424
      %426 = vrot.lane.b32.xlu0 %v423, 95
      %v427 = vpop.permute.xlu0 %426
      %v428 = vrot.slane %v425, 4
      %v429 = vrot.slane %v427, 4
      %v430 = vsel %vm261, %v428, %v429
      %vm431 = vcmask 777216
      %v432 = vsel %vm431, %v425, %v430
      %434 = vst [vmem:[#allocation3 + $0x18] sm:$0xcc] %v432
      %v435 = vld [vmem:[#allocation2] sm:$0xff]
      %v436 = vld [vmem:[#allocation2 + $0x8] sm:$0xf]
      %439 = vst [vmem:[#allocation1] ss:$2 sm:$0xff] %v435
      %s440 = scalar_lea.vmem [#allocation1], 16
      %441 = vst [vmem:[%s440] ss:$2 sm:$0xff] %v436
      %v442 = vld.sshfl [vmem:[#allocation1] sm:$0xff pattern:$0x75316420]
      %v443 = vld.sshfl [vmem:[#allocation1 + $0x8] sm:$0xff pattern:$0x75316420]
      %v444 = vld.sshfl [vmem:[#allocation1 + $0x10] sm:$0xff pattern:$0x75316420]
      %445 = vrot.lane.b32.xlu0 %v442, 94
      %v446 = vpop.permute.xlu0 %445
      %447 = vrot.lane.b32.xlu0 %v443, 94
      %v448 = vpop.permute.xlu0 %447
      %449 = vrot.lane.b32.xlu0 %v444, 94
      %v450 = vpop.permute.xlu0 %449
      %vm451 = vcmask 769024
      %v452 = vsel %vm451, %v446, %v448
      %v453 = vsel %vm451, %v448, %v450
      %v456 = vsel %vm271, %v452, 0.0
      %v457 = vsel %vm272, %v453, 0.0
      %v458 = vpack.c.bf16 %v457, %v456
      %459 = vst [vmem:[#allocation3 + $0x20] sm:$0x33] %v458
      %v460 = vld [vmem:[%s1] sm:$0xf]
      %v461 = vld [vmem:[#allocation3] sm:$0xff]
      %v462 = vld [vmem:[#allocation3 + $0x8] sm:$0xff]
      %v463 = vld [vmem:[#allocation3 + $0x10] sm:$0xff]
      %v464 = vld [vmem:[#allocation3 + $0x18] sm:$0xff]
      %v465 = vld [vmem:[#allocation3 + $0x20] sm:$0x33]
      %v466 = vld [vmem:[%s2] sm:$0xff]
      %468 = vset.pattern.permute.xlu0 0
      %469 = vperm.xlu0 %468, %v466
      %v470 = vpop.permute.xlu0 %469
      %v477 = vunpack.c.l.b16 %v461
      %v478 = vunpack.c.h.b16 %v461
      %v479 = vunpack.c.l.b16 %v462
      %v480 = vunpack.c.h.b16 %v462
      %v481 = vunpack.c.l.b16 %v463
      %v482 = vunpack.c.h.b16 %v463
      %v483 = vunpack.c.l.b16 %v464
      %v484 = vunpack.c.h.b16 %v464
      %v485 = vunpack.c.l.b16 %v465
      %v486 = vunpack.c.h.b16 %v465
      %v487 = vpack.c.b16 %v479, %v477
      %v488 = vpack.c.b16 %v480, %v478
      %v489 = vpack.c.b16 %v483, %v481
      %v490 = vpack.c.b16 %v484, %v482
      %v491 = vpack.c.b16 %v485, %v485
      %v492 = vpack.c.b16 %v486, %v486
      %vm497 = vcmask 293888
      %v499 = vsel %vm497, %v460, 0
      %vm501 = vcmask 1041408
      %v503 = vsel %vm501, %v491, 0
      %v506 = vsel %vm501, %v492, 0
      %508 = vmatpush.bf16.msra.mxu0 0
      %509 = vmatpush.bf16.msra.mxu0 0
      %510 = vmatpush.bf16.msra.mxu0 0
      %511 = vmatpush.bf16.msra.mxu0 0
      %512 = vmatpush.bf16.msra.mxu0 0
      %513 = vmatpush.bf16.msra.mxu0 %v503
      %514 = vmatpush.bf16.msra.mxu0 %v489
      %515 = vmatpush.bf16.msra.mxu0 %v487
      %516 = vmatmul.bf16.gmra.mxu0 %v499
      %v517 = vpop.f32.mrf.mxu0
      %v518 = vadd.f32 %v470, %v517
      %v519 = vpop.f32.mrf.mxu0
      %520 = vdwg.mxu0
      %521 = vmatpush.bf16.msra.mxu0 0
      %522 = vmatpush.bf16.msra.mxu0 0
      %523 = vmatpush.bf16.msra.mxu0 0
      %524 = vmatpush.bf16.msra.mxu0 0
      %525 = vmatpush.bf16.msra.mxu0 0
      %526 = vmatpush.bf16.msra.mxu0 %v506
      %527 = vmatpush.bf16.msra.mxu0 %v490
      %528 = vmatpush.bf16.msra.mxu0 %v488
      %529 = vmatmul.bf16.gmra.mxu0 %v499
      %v530 = vpop.f32.mrf.mxu0
      %v531 = vadd.f32 %v470, %v530
      %v532 = vpop.f32.mrf.mxu0
      %533 = vdwg.mxu0
      %vm534 = vcmp.gt.f32.partialorder %v518, 0.0
      %vm535 = vcmp.gt.f32.partialorder %v531, 0.0
      %v536 = vmul.f32 %v518, 1.442695
      %v537 = vpow.pop %v536
      %v538 = vmul.f32 %v531, 1.442695
      %v539 = vpow.pop %v538
      %v540 = vsub.f32 %v537, 1.0
      %v541 = vsub.f32 %v539, 1.0
      %v542 = vmul.f32 %v540, 1.6732632
      %v543 = vmul.f32 %v541, 1.6732632
      %v544 = vsel %vm534, %v518, %v542
      %v545 = vsel %vm535, %v531, %v543
      %v546 = vmul.f32 %v544, 1.050701
      %v547 = vmul.f32 %v545, 1.050701
      %548 = vst [vmem:[%s170] sm:$0xff] %v546
      %549 = vst [vmem:[%s170 + $0x8] sm:$0xff] %v547
      %p550 = scmp.lt.s32.totalorder %s14, 1
      %s551 = scalar_select %p550, %s14, 1
      %s552 = smul.addr %s551, 2
      %s553 = smul.addr %s552, 8
      %s554 = scalar_lea.vmem %s3, %s553
      // Predicated region
      $region33: #{basic_conv_forward.1} parent=31 // pred_check
        %p555 = pneg %p100
      $region34: #{basic_conv_forward.1} parent=31 // pred_check_branch
        %557 = sbr.rel (%p555) target = $region36
      $region35: #{basic_conv_forward.1} parent=31 // pred_region
        _
      $region36: #{basic_conv_forward.1} parent=31 // pred_fallthru
        _
    $region32: #{basic_conv_forward.1} parent=5 // pred_fallthru
      _
    %p558 = scmp.le.s32.totalorder 2, %s9
    // Predicated region
    $region37: #{basic_conv_forward.1} parent=5 // pred_check
      %p559 = pneg %p558
    $region38: #{basic_conv_forward.1} parent=5 // pred_check_branch
      %561 = sbr.rel (%p559) target = $region40
    $region39: #{basic_conv_forward.1} parent=5 // pred_region
      %s562 = ssub.s32 %s9, 2
      // Predicated region
      $region41: #{basic_conv_forward.1} parent=39 // pred_check
        %p563 = pneg %p106
      $region42: #{basic_conv_forward.1} parent=39 // pred_check_branch
        %565 = sbr.rel (%p563) target = $region44
      $region43: #{basic_conv_forward.1} parent=39 // pred_region
        %p566 = scmp.lt.s32.totalorder %s15, 1
        %s567 = scalar_select %p566, %s15, 1
        %s568 = smul.addr %s567, 2
        %s569 = smul.addr %s568, 8
        %s570 = scalar_lea.vmem %s3, %s569
      $region44: #{basic_conv_forward.1} parent=39 // pred_fallthru
        _
    $region40: #{basic_conv_forward.1} parent=5 // pred_fallthru
      _
  $region6: #{basic_conv_forward.1} parent=0 // loop_footer
    %s13 = sadd.s32 1, %s9
  $region7: #{basic_conv_forward.1} parent=0 // loop_footer_branch
    %8 = sbr.rel target = $region3
  $region8: #{basic_conv_forward.1} parent=0 // loop_exit
    _

</llo_original>
